<compile_context>
chip_gen: v6e
topology: v6e:2x2x1
jax: 0.10.0
libtpu: 0.0.40
codegen_flags: <defaults>
</compile_context>

<pallas_src>
import functools

import numpy as np
import jax
import jax.numpy as jnp
from jax.experimental import pallas as pl
from jax.experimental.pallas import tpu as pltpu


# ----------------------------------------------------------------------------
# Pallas kernels
# ----------------------------------------------------------------------------
def _cyclic_shift_roll_kernel(x_ref, o_ref, *, shift):
    """x_ref / o_ref: (S, Dt) tile. out[i, :] = x[(i - shift) mod S, :]."""
    if shift == 0:
        o_ref[...] = x_ref[...]
    else:
        # XLU sublane rotate: same semantics as np.roll / torch.roll along axis 0.
        o_ref[...] = pltpu.roll(x_ref[...], shift=shift, axis=0)


def _cyclic_shift_slice_kernel(x_ref, o_ref, *, shift):
    """Fallback: realize the roll as two static slice copies (no XLU rotate)."""
    S = x_ref.shape[0]
    if shift == 0:
        o_ref[...] = x_ref[...]
    else:
        o_ref[:shift, :] = x_ref[S - shift:, :]
        o_ref[shift:, :] = x_ref[:S - shift, :]


# ----------------------------------------------------------------------------
# Wrapper
# ----------------------------------------------------------------------------
def _pick_lane_tile(R, S, itemsize, budget_bytes=2 * 1024 * 1024):
    """Largest 128-multiple divisor of R whose (S, tile) slab fits the budget.

    If R is not 128-aligned we must take the full feature dim (BlockSpec rule:
    last-two block dims must be (8,128)-divisible OR equal the full array dims).
    """
    if R % 128 != 0 or S * R * itemsize <= budget_bytes:
        return R
    best = 128
    for t in range(128, R + 1, 128):
        if R % t == 0 and S * t * itemsize <= budget_bytes:
            best = t
    return best


def cyclic_shift_pallas(x, displacement, *, impl="roll"):
    """torch.roll(x, shifts=displacement, dims=1) as a Pallas TPU kernel.

    x: (B, S, ...) array; the roll is along axis 1. Trailing dims are flattened
    onto the lane axis so stores stay lane-dense.
    """
    if x.ndim < 2:
        raise ValueError("CyclicShift rolls dims=1; input must have >= 2 dims")
    B, S = int(x.shape[0]), int(x.shape[1])
    R = int(np.prod(x.shape[2:])) if x.ndim > 2 else 1
    shift = int(displacement) % S
    if shift == 0:
        return x  # identity roll

    x3 = x.reshape(B, S, R)
    Dt = _pick_lane_tile(R, S, jnp.dtype(x.dtype).itemsize)
    kern = _cyclic_shift_roll_kernel if impl == "roll" else _cyclic_shift_slice_kernel

    out = pl.pallas_call(
        functools.partial(kern, shift=shift),
        out_shape=jax.ShapeDtypeStruct((B, S, R), x.dtype),
        grid=(B, R // Dt),
        in_specs=[pl.BlockSpec((None, S, Dt), lambda b, j: (b, 0, j))],
        out_specs=pl.BlockSpec((None, S, Dt), lambda b, j: (b, 0, j)),
        compiler_params=pltpu.CompilerParams(
            dimension_semantics=("parallel", "parallel")),
    )(x3)
    return out.reshape(x.shape)


# ----------------------------------------------------------------------------
if __name__ == "__main__":
    key = jax.random.PRNGKey(0)
    k1, k2 = jax.random.split(key)

    window_size = 4
    displacement = window_size // 2  # attention1 uses CyclicShift(+/- window_size // 2)

    # (batch, seq, feature) activations as CyclicShift sees them inside attentionNet.
    x_big = jax.random.normal(k1, (2, 64, 128), jnp.float32)
    x_small = jax.random.normal(k2, (2, 8, 32), jnp.float32)  # toy-config shapes (seq=8, dim=32)

    cases = [
        (x_big, displacement),
        (x_big, -displacement),   # CyclicShift(-displacement) used in shifted blocks
        (x_small, displacement),
    ]

    def run_all(impl):
        for x, d in cases:
            y = jax.block_until_ready(cyclic_shift_pallas(x, d, impl=impl))
            ref = jnp.roll(x, d, axis=1)  # == torch.roll(x, shifts=d, dims=1)
            assert y.shape == x.shape, (y.shape, x.shape)
            assert bool(jnp.array_equal(y, ref)), f"cyclic shift mismatch (impl={impl}, d={d})"

    try:
        run_all("roll")    # fast path: in-kernel XLU rotate
    except Exception:
        # TODO(synk): remove fallback once pltpu.roll covers every shape/dtype we need.
        run_all("slice")   # slice-copy kernel, identical semantics

    print("KERNEL_OK")
</pallas_src>

<mosaic_0001>
module attributes {stable_mosaic.version = 11 : i64} {
  func.func @_cyclic_shift_roll_kernel(%arg0: i32, %arg1: i32, %arg2: memref<1x64x128xf32, #tpu.memory_space<vmem>>, %arg3: memref<1x64x128xf32, #tpu.memory_space<vmem>>) attributes {dimension_semantics = [#tpu.dimension_semantics<parallel>, #tpu.dimension_semantics<parallel>], iteration_bounds = array<i64: 2, 1>, scalar_prefetch = 0 : i64, scratch_operands = 0 : i64, tpu.core_type = #tpu.core_type<tc>, window_params = [{transform_indices = @transform_0, window_bounds = array<i64: 1, 64, 128>}, {transform_indices = @transform_1, window_bounds = array<i64: 1, 64, 128>}]} {
    %c0 = arith.constant 0 : index
    %c0_0 = arith.constant 0 : index
    %c0_1 = arith.constant 0 : index
    %0 = vector.load %arg2[%c0, %c0_0, %c0_1] : memref<1x64x128xf32, #tpu.memory_space<vmem>>, vector<1x64x128xf32>
    %1 = vector.shape_cast %0 : vector<1x64x128xf32> to vector<64x128xf32>
    %c2_i32 = arith.constant 2 : i32
    %2 = tpu.dynamic_rotate %1 by %c2_i32 dim 0 : vector<64x128xf32>, i32 -> vector<64x128xf32>
    %c0_2 = arith.constant 0 : index
    %c0_3 = arith.constant 0 : index
    %c0_4 = arith.constant 0 : index
    %3 = vector.load %arg3[%c0_2, %c0_3, %c0_4] : memref<1x64x128xf32, #tpu.memory_space<vmem>>, vector<1x64x128xf32>
    %4 = vector.shape_cast %3 : vector<1x64x128xf32> to vector<64x128xf32>
    %5 = vector.shape_cast %2 : vector<64x128xf32> to vector<1x64x128xf32>
    tpu.vector_store %arg3[%c0_2, %c0_3, %c0_4], %5 {strides = array<i32>} : memref<1x64x128xf32, #tpu.memory_space<vmem>>, vector<1x64x128xf32>,
    return
  }
  func.func @transform_0(%arg0: i32, %arg1: i32) -> (i32, i32, i32) {
    %c0_i32 = arith.constant 0 : i32
    %c0_i32_0 = arith.constant 0 : i32
    return %arg0, %c0_i32, %arg1 : i32, i32, i32
  }
  func.func @transform_1(%arg0: i32, %arg1: i32) -> (i32, i32, i32) {
    %c0_i32 = arith.constant 0 : i32
    %c0_i32_0 = arith.constant 0 : i32
    return %arg0, %c0_i32, %arg1 : i32, i32, i32
  }
}

module attributes {stable_mosaic.version = 11 : i64} {
  func.func @_cyclic_shift_slice_kernel(%arg0: i32, %arg1: i32, %arg2: memref<1x64x128xf32, #tpu.memory_space<vmem>>, %arg3: memref<1x64x128xf32, #tpu.memory_space<vmem>>) attributes {dimension_semantics = [#tpu.dimension_semantics<parallel>, #tpu.dimension_semantics<parallel>], iteration_bounds = array<i64: 2, 1>, scalar_prefetch = 0 : i64, scratch_operands = 0 : i64, tpu.core_type = #tpu.core_type<tc>, window_params = [{transform_indices = @transform_0, window_bounds = array<i64: 1, 64, 128>}, {transform_indices = @transform_1, window_bounds = array<i64: 1, 64, 128>}]} {
    %c0 = arith.constant 0 : index
    %c62 = arith.constant 62 : index
    %c0_0 = arith.constant 0 : index
    %0 = vector.load %arg2[%c0, %c62, %c0_0] : memref<1x64x128xf32, #tpu.memory_space<vmem>>, vector<1x2x128xf32>
    %1 = vector.shape_cast %0 : vector<1x2x128xf32> to vector<2x128xf32>
    %c0_1 = arith.constant 0 : index
    %c0_2 = arith.constant 0 : index
    %c0_3 = arith.constant 0 : index
    %2 = vector.load %arg3[%c0_1, %c0_2, %c0_3] : memref<1x64x128xf32, #tpu.memory_space<vmem>>, vector<1x2x128xf32>
    %3 = vector.shape_cast %2 : vector<1x2x128xf32> to vector<2x128xf32>
    %4 = vector.shape_cast %1 : vector<2x128xf32> to vector<1x2x128xf32>
    tpu.vector_store %arg3[%c0_1, %c0_2, %c0_3], %4 {strides = array<i32>} : memref<1x64x128xf32, #tpu.memory_space<vmem>>, vector<1x2x128xf32>,
    %c0_4 = arith.constant 0 : index
    %c0_5 = arith.constant 0 : index
    %c0_6 = arith.constant 0 : index
    %5 = vector.load %arg2[%c0_4, %c0_5, %c0_6] : memref<1x64x128xf32, #tpu.memory_space<vmem>>, vector<1x62x128xf32>
    %6 = vector.shape_cast %5 : vector<1x62x128xf32> to vector<62x128xf32>
    %c0_7 = arith.constant 0 : index
    %c2 = arith.constant 2 : index
    %c0_8 = arith.constant 0 : index
    %7 = vector.load %arg3[%c0_7, %c2, %c0_8] : memref<1x64x128xf32, #tpu.memory_space<vmem>>, vector<1x62x128xf32>
    %8 = vector.shape_cast %7 : vector<1x62x128xf32> to vector<62x128xf32>
    %9 = vector.shape_cast %6 : vector<62x128xf32> to vector<1x62x128xf32>
    tpu.vector_store %arg3[%c0_7, %c2, %c0_8], %9 {strides = array<i32>} : memref<1x64x128xf32, #tpu.memory_space<vmem>>, vector<1x62x128xf32>,
    return
  }
  func.func @transform_0(%arg0: i32, %arg1: i32) -> (i32, i32, i32) {
    %c0_i32 = arith.constant 0 : i32
    %c0_i32_0 = arith.constant 0 : i32
    return %arg0, %c0_i32, %arg1 : i32, i32, i32
  }
  func.func @transform_1(%arg0: i32, %arg1: i32) -> (i32, i32, i32) {
    %c0_i32 = arith.constant 0 : i32
    %c0_i32_0 = arith.constant 0 : i32
    return %arg0, %c0_i32, %arg1 : i32, i32, i32
  }
}

</mosaic_0001>

<llo_original>
// kernel: tpu_custom_call.1
$region0: #{tpu_custom_call.1}
  #allocation0 [shape = 'u32[]', space=smem, size = 0x4, offset = 0x4, fixed_abs, tag = 'smem constant byte address 0x4 - core index']
  #allocation1 [shape = 'u32[144,128]{1,0:T(1,128)}', space=vmem, size = 0x12000, scoped, tag = 'internal scratch']
  %s0 = inlined_call_operand.hbm [shape: f32[2,64,128], index: 0, kind: input, shape index: {}]
  %s1 = inlined_call_operand.hbm [shape: f32[2,64,128], index: 1, kind: output, shape index: {}]
  %s2 = sld [smem:[#allocation0]]
  $region41: #{tpu_custom_call.1} parent=0
    _
  %s4 = ssub.s32 1, %s2
  %s5 = scalar_select 0, %s4, %s2
  $region1: #{tpu_custom_call.1} parent=0
    #allocation2 [shape = 'u8[65536]{0}', space=vmem, size = 0x10000, scoped, tag = 'input window, operand 0']
    #allocation3 [shape = 's32[2]{0}', space=sflag, size = 0x8, scoped, tag = 'scoped memory for tpu_custom_call.1']
    #allocation4 [shape = 's32[2]{0}', space=sflag, size = 0x8, scoped, tag = 'scoped memory for tpu_custom_call.1']
    #allocation5 [shape = 'u8[65536]{0}', space=vmem, size = 0x10000, scoped, tag = 'output window, operand 0']
    %6 = vsyncpa [#allocation3], 0
    %s7 = scalar_lea.sflag [#allocation3], 1
    %8 = vsyncpa %s7, 0
    %9 = vsyncpa [#allocation4], 0
    %s10 = scalar_lea.sflag [#allocation4], 1
    %11 = vsyncpa %s10, 0
    loop: start=0, step=1, limit=4
    $region2: #{tpu_custom_call.1} parent=1 // loop_pre_header
      _
    $region3: #{tpu_custom_call.1} parent=1 // loop_header
      %s13 = sphi 0, %s17
      %p14 = scmp.ge.s32.totalorder %s13, 4
      %s20 = sphi 0, %s32
      %s21 = sphi 0, %s28
      %s22 = sphi 0, %s20
      %s23 = sphi 0, %s21
      %s24 = sphi 0, %s22
      %s25 = sphi 0, %s23
      %s37 = sphi 0, %s39
      %s40 = sphi 0, %s37
      %s41 = sphi 0, %s40
      %s57 = sphi 0, %s41
      %s65 = sphi 0, %s67
      %s68 = sphi 0, %s65
      %s69 = sphi 0, %s68
      %s85 = sphi 0, %s69
    $region4: #{tpu_custom_call.1} parent=1 // loop_header_branch
      %16 = sbr.rel (%p14) target = $region8
    $region5: #{tpu_custom_call.1} parent=1 // loop_body
      %s18 = ssub.s32 %s13, 1
      %s19 = ssub.s32 %s13, 2
      %s26 = sadd.s32 1, %s21
      %p27 = scmp.ge.s32.totalorder %s26, 1
      %s28 = scalar_select %p27, 0, %s26
      %s29 = sadd.s32 1, %s20
      %s30 = scalar_select %p27, %s29, %s20
      %p31 = scmp.ge.s32.totalorder %s30, 2
      %s32 = scalar_select %p31, 0, %s30
      %s33 = ssub.s32 %s20, %s32
      %s34 = ssub.s32 %s21, %s28
      %s35 = sor.u32 %s33, %s34
      %p36 = scmp.eq.s32.totalorder %s35, 0
      %s38 = sadd.s32 %s37, 1
      %s39 = scalar_select %p36, %s37, %s38
      %p42 = pneg %p36
      %p43 = scmp.eq.s32.totalorder %s13, 1
      %p44 = por %p42, %p43
      %p45 = scmp.ne.s32.totalorder %s37, %s40
      %p46 = scmp.eq.s32.totalorder %s13, 0
      %p47 = por %p45, %p46
      %p48 = scmp.ne.s32.totalorder %s37, %s40
      %p49 = scmp.eq.s32.totalorder %s18, 1
      %p50 = por %p48, %p49
      %p51 = scmp.ne.s32.totalorder %s40, %s41
      %p52 = scmp.eq.s32.totalorder %s18, 0
      %p53 = por %p51, %p52
      %p54 = scmp.ne.s32.totalorder %s40, %s41
      %p55 = scmp.eq.s32.totalorder %s19, 1
      %p56 = por %p54, %p55
      %p58 = scmp.ne.s32.totalorder %s41, %s57
      %p59 = scmp.eq.s32.totalorder %s19, 0
      %p60 = por %p58, %p59
      %s61 = ssub.s32 %s20, %s32
      %s62 = ssub.s32 %s21, %s28
      %s63 = sor.u32 %s61, %s62
      %p64 = scmp.eq.s32.totalorder %s63, 0
      %s66 = sadd.s32 %s65, 1
      %s67 = scalar_select %p64, %s65, %s66
      %p70 = pneg %p64
      %p71 = scmp.eq.s32.totalorder %s13, 1
      %p72 = por %p70, %p71
      %p73 = scmp.ne.s32.totalorder %s65, %s68
      %p74 = scmp.eq.s32.totalorder %s13, 0
      %p75 = por %p73, %p74
      %p76 = scmp.ne.s32.totalorder %s65, %s68
      %p77 = scmp.eq.s32.totalorder %s18, 1
      %p78 = por %p76, %p77
      %p79 = scmp.ne.s32.totalorder %s68, %s69
      %p80 = scmp.eq.s32.totalorder %s18, 0
      %p81 = por %p79, %p80
      %p82 = scmp.ne.s32.totalorder %s68, %s69
      %p83 = scmp.eq.s32.totalorder %s19, 1
      %p84 = por %p82, %p83
      %p86 = scmp.ne.s32.totalorder %s69, %s85
      %p87 = scmp.eq.s32.totalorder %s19, 0
      %p88 = por %p86, %p87
      %p89 = scmp.le.s32.totalorder 1, %s13
      %p90 = scmp.lt.s32.totalorder %s13, 3
      %p91 = pnand %p89, %p90
      %p92 = pneg %p91
      // Predicated region
      $region9: #{tpu_custom_call.1} parent=5 // pred_check
        _
      $region10: #{tpu_custom_call.1} parent=5 // pred_check_branch
        %94 = sbr.rel (%p91) target = $region12
      $region11: #{tpu_custom_call.1} parent=5 // pred_region
        %s95 = ssub.s32 %s13, 1
      $region12: #{tpu_custom_call.1} parent=5 // pred_fallthru
        _
      %p96 = scmp.lt.s32.totalorder %s13, 2
      // Predicated region
      $region13: #{tpu_custom_call.1} parent=5 // pred_check
        %p97 = pneg %p96
      $region14: #{tpu_custom_call.1} parent=5 // pred_check_branch
        %99 = sbr.rel (%p97) target = $region16
      $region15: #{tpu_custom_call.1} parent=5 // pred_region
        // Predicated region
        $region17: #{tpu_custom_call.1} parent=15 // pred_check
          %p100 = pneg %p47
        $region18: #{tpu_custom_call.1} parent=15 // pred_check_branch
          %102 = sbr.rel (%p100) target = $region20
        $region19: #{tpu_custom_call.1} parent=15 // pred_region
          %s103 = sand.u32 %s37, 1
          %s104 = scalar_lea.sflag [#allocation3], %s103
          %s105 = sand.u32 %s37, 1
          %s106 = smul.addr %s105, 64
          %s107 = scalar_lea.vmem [#allocation2], %s106
          %s109 = ssub.s32 1024, 1024
          %110 = vsyncadd %s104, %s109
          %s111 = smul.addr %s20, 8
          %s112 = sadd.s32 %s21, %s111
          %s113 = smul.addr %s112, 128
          %s114 = scalar_lea.hbm %s0, %s113
          %s115 = sshll.u32 %s107, 4
          %s116 = int_to_ptr.vmem [resolvable:$true] %s115
          %121 = dma.hbm_to_vmem [thread:$0]  %s114, 1024, %s116, %s104, 128, 128, 8
        $region20: #{tpu_custom_call.1} parent=15 // pred_fallthru
          _
      $region16: #{tpu_custom_call.1} parent=5 // pred_fallthru
        _
      %p122 = scmp.le.s32.totalorder 1, %s13
      %p123 = scmp.lt.s32.totalorder %s13, 3
      %p124 = pnand %p122, %p123
      %p125 = pneg %p124
      // Predicated region
      $region21: #{tpu_custom_call.1} parent=5 // pred_check
        _
      $region22: #{tpu_custom_call.1} parent=5 // pred_check_branch
        %127 = sbr.rel (%p124) target = $region24
      $region23: #{tpu_custom_call.1} parent=5 // pred_region
        %s128 = ssub.s32 %s13, 1
        %s129 = sand.u32 %s40, 1
        %s130 = scalar_lea.sflag [#allocation3], %s129
        %s131 = sand.u32 %s40, 1
        %s132 = smul.addr %s131, 64
        %s133 = scalar_lea.vmem [#allocation2], %s132
        // Predicated region
        $region25: #{tpu_custom_call.1} parent=23 // pred_check
          %p134 = pneg %p53
        $region26: #{tpu_custom_call.1} parent=23 // pred_check_branch
          %136 = sbr.rel (%p134) target = $region28
        $region27: #{tpu_custom_call.1} parent=23 // pred_region
          %137 = dma.done %s130, 1024
        $region28: #{tpu_custom_call.1} parent=23 // pred_fallthru
          _
        %s138 = sand.u32 %s40, 1
        %s139 = scalar_lea.sflag [#allocation3], %s138
        %s140 = sand.u32 %s40, 1
        %s141 = smul.addr %s140, 64
        %s142 = scalar_lea.vmem [#allocation2], %s141
        %p143 = pneg %p53
        %p144 = pneg %p50
        %p145 = pneg %p81
        %p146 = pneg %p78
        %s147 = sand.u32 %s68, 1
        %s148 = scalar_lea.sflag [#allocation4], %s147
        %s149 = sand.u32 %s68, 1
        %s150 = smul.addr %s149, 64
        %s151 = scalar_lea.vmem [#allocation5], %s150
        %v152 = vld [vmem:[%s133] sm:$0xff]
        %v153 = vld [vmem:[%s133 + $0x8] sm:$0xff]
        %v154 = vld [vmem:[%s133 + $0x10] sm:$0xff]
        %v155 = vld [vmem:[%s133 + $0x18] sm:$0xff]
        %v156 = vld [vmem:[%s133 + $0x20] sm:$0xff]
        %v157 = vld [vmem:[%s133 + $0x28] sm:$0xff]
        %v158 = vld [vmem:[%s133 + $0x30] sm:$0xff]
        %v159 = vld [vmem:[%s133 + $0x38] sm:$0xff]
        %v160 = vrot.slane %v152, 6
        %v161 = vrot.slane %v153, 6
        %v162 = vrot.slane %v154, 6
        %v163 = vrot.slane %v155, 6
        %v164 = vrot.slane %v156, 6
        %v165 = vrot.slane %v157, 6
        %v166 = vrot.slane %v158, 6
        %v167 = vrot.slane %v159, 6
        %v168 = vlaneseq
        %v169 = vshrl.u32 %v168, 7
        %vm170 = vcmp.lt.s32.totalorder %v169, 2
        %v171 = vsel %vm170, %v166, %v167
        %v172 = vsel %vm170, %v165, %v166
        %v173 = vsel %vm170, %v164, %v165
        %v174 = vsel %vm170, %v163, %v164
        %v175 = vsel %vm170, %v162, %v163
        %v176 = vsel %vm170, %v161, %v162
        %v177 = vsel %vm170, %v160, %v161
        %v178 = vsel %vm170, %v167, %v160
        %179 = vst [vmem:[%s151] sm:$0xff] %v178
        %180 = vst [vmem:[%s151 + $0x8] sm:$0xff] %v177
        %181 = vst [vmem:[%s151 + $0x10] sm:$0xff] %v176
        %182 = vst [vmem:[%s151 + $0x18] sm:$0xff] %v175
        %183 = vst [vmem:[%s151 + $0x20] sm:$0xff] %v174
        %184 = vst [vmem:[%s151 + $0x28] sm:$0xff] %v173
        %185 = vst [vmem:[%s151 + $0x30] sm:$0xff] %v172
        %186 = vst [vmem:[%s151 + $0x38] sm:$0xff] %v171
        %s187 = sand.u32 %s68, 1
        %s188 = scalar_lea.sflag [#allocation4], %s187
        %s189 = sand.u32 %s68, 1
        %s190 = smul.addr %s189, 64
        %s191 = scalar_lea.vmem [#allocation5], %s190
        // Predicated region
        $region29: #{tpu_custom_call.1} parent=23 // pred_check
          %p192 = pneg %p78
        $region30: #{tpu_custom_call.1} parent=23 // pred_check_branch
          %194 = sbr.rel (%p192) target = $region32
        $region31: #{tpu_custom_call.1} parent=23 // pred_region
          %s196 = ssub.s32 1024, 1024
          %197 = vsyncadd %s188, %s196
          %s198 = smul.addr %s22, 8
          %s199 = sadd.s32 %s23, %s198
          %s200 = smul.addr %s199, 128
          %s201 = scalar_lea.hbm %s1, %s200
          %s202 = sshll.u32 %s191, 4
          %s203 = int_to_ptr.vmem [resolvable:$true] %s202
          %208 = dma.vmem_to_hbm [thread:$0]  %s203, 1024, %s201, %s188, 128, 128, 8
        $region32: #{tpu_custom_call.1} parent=23 // pred_fallthru
          _
      $region24: #{tpu_custom_call.1} parent=5 // pred_fallthru
        _
      %p209 = scmp.le.s32.totalorder 2, %s13
      // Predicated region
      $region33: #{tpu_custom_call.1} parent=5 // pred_check
        %p210 = pneg %p209
      $region34: #{tpu_custom_call.1} parent=5 // pred_check_branch
        %212 = sbr.rel (%p210) target = $region36
      $region35: #{tpu_custom_call.1} parent=5 // pred_region
        %s213 = ssub.s32 %s13, 2
        // Predicated region
        $region37: #{tpu_custom_call.1} parent=35 // pred_check
          %p214 = pneg %p84
        $region38: #{tpu_custom_call.1} parent=35 // pred_check_branch
          %216 = sbr.rel (%p214) target = $region40
        $region39: #{tpu_custom_call.1} parent=35 // pred_region
          %s217 = sand.u32 %s69, 1
          %s218 = scalar_lea.sflag [#allocation4], %s217
          %s219 = sand.u32 %s69, 1
          %s220 = smul.addr %s219, 64
          %s221 = scalar_lea.vmem [#allocation5], %s220
          %222 = dma.done %s218, 1024
        $region40: #{tpu_custom_call.1} parent=35 // pred_fallthru
          _
      $region36: #{tpu_custom_call.1} parent=5 // pred_fallthru
        _
    $region6: #{tpu_custom_call.1} parent=1 // loop_footer
      %s17 = sadd.s32 1, %s13
    $region7: #{tpu_custom_call.1} parent=1 // loop_footer_branch
      %12 = sbr.rel target = $region3
    $region8: #{tpu_custom_call.1} parent=1 // loop_exit
      _
    %223 = vsyncpa [#allocation3], 1
    %s224 = scalar_lea.sflag [#allocation3], 1
    %225 = vsyncpa %s224, 1
    %226 = vsyncpa [#allocation4], 1
    %s227 = scalar_lea.sflag [#allocation4], 1
    %228 = vsyncpa %s227, 1

// kernel: tpu_custom_call.1
$region0: #{tpu_custom_call.1}
  #allocation0 [shape = 'u32[]', space=smem, size = 0x4, offset = 0x4, fixed_abs, tag = 'smem constant byte address 0x4 - core index']
  #allocation1 [shape = 'u32[144,128]{1,0:T(1,128)}', space=vmem, size = 0x12000, scoped, tag = 'internal scratch']
  %s0 = inlined_call_operand.hbm [shape: f32[2,64,128], index: 0, kind: input, shape index: {}]
  %s1 = inlined_call_operand.hbm [shape: f32[2,64,128], index: 1, kind: output, shape index: {}]
  %s2 = sld [smem:[#allocation0]]
  $region41: #{tpu_custom_call.1} parent=0
    _
  %s4 = ssub.s32 1, %s2
  %s5 = scalar_select 0, %s4, %s2
  $region1: #{tpu_custom_call.1} parent=0
    #allocation2 [shape = 'u8[65536]{0}', space=vmem, size = 0x10000, scoped, tag = 'input window, operand 0']
    #allocation3 [shape = 's32[2]{0}', space=sflag, size = 0x8, scoped, tag = 'scoped memory for tpu_custom_call.1']
    #allocation4 [shape = 's32[2]{0}', space=sflag, size = 0x8, scoped, tag = 'scoped memory for tpu_custom_call.1']
    #allocation5 [shape = 'u8[65536]{0}', space=vmem, size = 0x10000, scoped, tag = 'output window, operand 0']
    %6 = vsyncpa [#allocation3], 0
    %s7 = scalar_lea.sflag [#allocation3], 1
    %8 = vsyncpa %s7, 0
    %9 = vsyncpa [#allocation4], 0
    %s10 = scalar_lea.sflag [#allocation4], 1
    %11 = vsyncpa %s10, 0
    loop: start=0, step=1, limit=4
    $region2: #{tpu_custom_call.1} parent=1 // loop_pre_header
      _
    $region3: #{tpu_custom_call.1} parent=1 // loop_header
      %s13 = sphi 0, %s17
      %p14 = scmp.ge.s32.totalorder %s13, 4
      %s20 = sphi 0, %s32
      %s21 = sphi 0, %s28
      %s22 = sphi 0, %s20
      %s23 = sphi 0, %s21
      %s24 = sphi 0, %s22
      %s25 = sphi 0, %s23
      %s37 = sphi 0, %s39
      %s40 = sphi 0, %s37
      %s41 = sphi 0, %s40
      %s57 = sphi 0, %s41
      %s65 = sphi 0, %s67
      %s68 = sphi 0, %s65
      %s69 = sphi 0, %s68
      %s85 = sphi 0, %s69
    $region4: #{tpu_custom_call.1} parent=1 // loop_header_branch
      %16 = sbr.rel (%p14) target = $region8
    $region5: #{tpu_custom_call.1} parent=1 // loop_body
      %s18 = ssub.s32 %s13, 1
      %s19 = ssub.s32 %s13, 2
      %s26 = sadd.s32 1, %s21
      %p27 = scmp.ge.s32.totalorder %s26, 1
      %s28 = scalar_select %p27, 0, %s26
      %s29 = sadd.s32 1, %s20
      %s30 = scalar_select %p27, %s29, %s20
      %p31 = scmp.ge.s32.totalorder %s30, 2
      %s32 = scalar_select %p31, 0, %s30
      %s33 = ssub.s32 %s20, %s32
      %s34 = ssub.s32 %s21, %s28
      %s35 = sor.u32 %s33, %s34
      %p36 = scmp.eq.s32.totalorder %s35, 0
      %s38 = sadd.s32 %s37, 1
      %s39 = scalar_select %p36, %s37, %s38
      %p42 = pneg %p36
      %p43 = scmp.eq.s32.totalorder %s13, 1
      %p44 = por %p42, %p43
      %p45 = scmp.ne.s32.totalorder %s37, %s40
      %p46 = scmp.eq.s32.totalorder %s13, 0
      %p47 = por %p45, %p46
      %p48 = scmp.ne.s32.totalorder %s37, %s40
      %p49 = scmp.eq.s32.totalorder %s18, 1
      %p50 = por %p48, %p49
      %p51 = scmp.ne.s32.totalorder %s40, %s41
      %p52 = scmp.eq.s32.totalorder %s18, 0
      %p53 = por %p51, %p52
      %p54 = scmp.ne.s32.totalorder %s40, %s41
      %p55 = scmp.eq.s32.totalorder %s19, 1
      %p56 = por %p54, %p55
      %p58 = scmp.ne.s32.totalorder %s41, %s57
      %p59 = scmp.eq.s32.totalorder %s19, 0
      %p60 = por %p58, %p59
      %s61 = ssub.s32 %s20, %s32
      %s62 = ssub.s32 %s21, %s28
      %s63 = sor.u32 %s61, %s62
      %p64 = scmp.eq.s32.totalorder %s63, 0
      %s66 = sadd.s32 %s65, 1
      %s67 = scalar_select %p64, %s65, %s66
      %p70 = pneg %p64
      %p71 = scmp.eq.s32.totalorder %s13, 1
      %p72 = por %p70, %p71
      %p73 = scmp.ne.s32.totalorder %s65, %s68
      %p74 = scmp.eq.s32.totalorder %s13, 0
      %p75 = por %p73, %p74
      %p76 = scmp.ne.s32.totalorder %s65, %s68
      %p77 = scmp.eq.s32.totalorder %s18, 1
      %p78 = por %p76, %p77
      %p79 = scmp.ne.s32.totalorder %s68, %s69
      %p80 = scmp.eq.s32.totalorder %s18, 0
      %p81 = por %p79, %p80
      %p82 = scmp.ne.s32.totalorder %s68, %s69
      %p83 = scmp.eq.s32.totalorder %s19, 1
      %p84 = por %p82, %p83
      %p86 = scmp.ne.s32.totalorder %s69, %s85
      %p87 = scmp.eq.s32.totalorder %s19, 0
      %p88 = por %p86, %p87
      %p89 = scmp.le.s32.totalorder 1, %s13
      %p90 = scmp.lt.s32.totalorder %s13, 3
      %p91 = pnand %p89, %p90
      %p92 = pneg %p91
      // Predicated region
      $region9: #{tpu_custom_call.1} parent=5 // pred_check
        _
      $region10: #{tpu_custom_call.1} parent=5 // pred_check_branch
        %94 = sbr.rel (%p91) target = $region12
      $region11: #{tpu_custom_call.1} parent=5 // pred_region
        %s95 = ssub.s32 %s13, 1
      $region12: #{tpu_custom_call.1} parent=5 // pred_fallthru
        _
      %p96 = scmp.lt.s32.totalorder %s13, 2
      // Predicated region
      $region13: #{tpu_custom_call.1} parent=5 // pred_check
        %p97 = pneg %p96
      $region14: #{tpu_custom_call.1} parent=5 // pred_check_branch
        %99 = sbr.rel (%p97) target = $region16
      $region15: #{tpu_custom_call.1} parent=5 // pred_region
        // Predicated region
        $region17: #{tpu_custom_call.1} parent=15 // pred_check
          %p100 = pneg %p47
        $region18: #{tpu_custom_call.1} parent=15 // pred_check_branch
          %102 = sbr.rel (%p100) target = $region20
        $region19: #{tpu_custom_call.1} parent=15 // pred_region
          %s103 = sand.u32 %s37, 1
          %s104 = scalar_lea.sflag [#allocation3], %s103
          %s105 = sand.u32 %s37, 1
          %s106 = smul.addr %s105, 64
          %s107 = scalar_lea.vmem [#allocation2], %s106
          %s109 = ssub.s32 1024, 1024
          %110 = vsyncadd %s104, %s109
          %s111 = smul.addr %s20, 8
          %s112 = sadd.s32 %s21, %s111
          %s113 = smul.addr %s112, 128
          %s114 = scalar_lea.hbm %s0, %s113
          %s115 = sshll.u32 %s107, 4
          %s116 = int_to_ptr.vmem [resolvable:$true] %s115
          %121 = dma.hbm_to_vmem [thread:$0]  %s114, 1024, %s116, %s104, 128, 128, 8
        $region20: #{tpu_custom_call.1} parent=15 // pred_fallthru
          _
      $region16: #{tpu_custom_call.1} parent=5 // pred_fallthru
        _
      %p122 = scmp.le.s32.totalorder 1, %s13
      %p123 = scmp.lt.s32.totalorder %s13, 3
      %p124 = pnand %p122, %p123
      %p125 = pneg %p124
      // Predicated region
      $region21: #{tpu_custom_call.1} parent=5 // pred_check
        _
      $region22: #{tpu_custom_call.1} parent=5 // pred_check_branch
        %127 = sbr.rel (%p124) target = $region24
      $region23: #{tpu_custom_call.1} parent=5 // pred_region
        %s128 = ssub.s32 %s13, 1
        %s129 = sand.u32 %s40, 1
        %s130 = scalar_lea.sflag [#allocation3], %s129
        %s131 = sand.u32 %s40, 1
        %s132 = smul.addr %s131, 64
        %s133 = scalar_lea.vmem [#allocation2], %s132
        // Predicated region
        $region25: #{tpu_custom_call.1} parent=23 // pred_check
          %p134 = pneg %p53
        $region26: #{tpu_custom_call.1} parent=23 // pred_check_branch
          %136 = sbr.rel (%p134) target = $region28
        $region27: #{tpu_custom_call.1} parent=23 // pred_region
          %137 = dma.done %s130, 1024
        $region28: #{tpu_custom_call.1} parent=23 // pred_fallthru
          _
        %s138 = sand.u32 %s40, 1
        %s139 = scalar_lea.sflag [#allocation3], %s138
        %s140 = sand.u32 %s40, 1
        %s141 = smul.addr %s140, 64
        %s142 = scalar_lea.vmem [#allocation2], %s141
        %p143 = pneg %p53
        %p144 = pneg %p50
        %p145 = pneg %p81
        %p146 = pneg %p78
        %s147 = sand.u32 %s68, 1
        %s148 = scalar_lea.sflag [#allocation4], %s147
        %s149 = sand.u32 %s68, 1
        %s150 = smul.addr %s149, 64
        %s151 = scalar_lea.vmem [#allocation5], %s150
        %v152 = vld [vmem:[%s133 + $0x3e] sm:$0x3]
        %153 = vst [vmem:[%s151] sm:$0x3] %v152
        %v154 = vld [vmem:[%s133] sm:$0xff]
        %v155 = vld [vmem:[%s133 + $0x8] sm:$0xff]
        %v156 = vld [vmem:[%s133 + $0x10] sm:$0xff]
        %v157 = vld [vmem:[%s133 + $0x18] sm:$0xff]
        %v158 = vld [vmem:[%s133 + $0x20] sm:$0xff]
        %v159 = vld [vmem:[%s133 + $0x28] sm:$0xff]
        %v160 = vld [vmem:[%s133 + $0x30] sm:$0xff]
        %v161 = vld [vmem:[%s133 + $0x38] sm:$0x3f]
        %162 = vst [vmem:[%s151 + $0x2] sm:$0xff] %v154
        %163 = vst [vmem:[%s151 + $0xa] sm:$0xff] %v155
        %164 = vst [vmem:[%s151 + $0x12] sm:$0xff] %v156
        %165 = vst [vmem:[%s151 + $0x1a] sm:$0xff] %v157
        %166 = vst [vmem:[%s151 + $0x22] sm:$0xff] %v158
        %167 = vst [vmem:[%s151 + $0x2a] sm:$0xff] %v159
        %168 = vst [vmem:[%s151 + $0x32] sm:$0xff] %v160
        %169 = vst [vmem:[%s151 + $0x3a] sm:$0x3f] %v161
        %s170 = sand.u32 %s68, 1
        %s171 = scalar_lea.sflag [#allocation4], %s170
        %s172 = sand.u32 %s68, 1
        %s173 = smul.addr %s172, 64
        %s174 = scalar_lea.vmem [#allocation5], %s173
        // Predicated region
        $region29: #{tpu_custom_call.1} parent=23 // pred_check
          %p175 = pneg %p78
        $region30: #{tpu_custom_call.1} parent=23 // pred_check_branch
          %177 = sbr.rel (%p175) target = $region32
        $region31: #{tpu_custom_call.1} parent=23 // pred_region
          %s179 = ssub.s32 1024, 1024
          %180 = vsyncadd %s171, %s179
          %s181 = smul.addr %s22, 8
          %s182 = sadd.s32 %s23, %s181
          %s183 = smul.addr %s182, 128
          %s184 = scalar_lea.hbm %s1, %s183
          %s185 = sshll.u32 %s174, 4
          %s186 = int_to_ptr.vmem [resolvable:$true] %s185
          %191 = dma.vmem_to_hbm [thread:$0]  %s186, 1024, %s184, %s171, 128, 128, 8
        $region32: #{tpu_custom_call.1} parent=23 // pred_fallthru
          _
      $region24: #{tpu_custom_call.1} parent=5 // pred_fallthru
        _
      %p192 = scmp.le.s32.totalorder 2, %s13
      // Predicated region
      $region33: #{tpu_custom_call.1} parent=5 // pred_check
        %p193 = pneg %p192
      $region34: #{tpu_custom_call.1} parent=5 // pred_check_branch
        %195 = sbr.rel (%p193) target = $region36
      $region35: #{tpu_custom_call.1} parent=5 // pred_region
        %s196 = ssub.s32 %s13, 2
        // Predicated region
        $region37: #{tpu_custom_call.1} parent=35 // pred_check
          %p197 = pneg %p84
        $region38: #{tpu_custom_call.1} parent=35 // pred_check_branch
          %199 = sbr.rel (%p197) target = $region40
        $region39: #{tpu_custom_call.1} parent=35 // pred_region
          %s200 = sand.u32 %s69, 1
          %s201 = scalar_lea.sflag [#allocation4], %s200
          %s202 = sand.u32 %s69, 1
          %s203 = smul.addr %s202, 64
          %s204 = scalar_lea.vmem [#allocation5], %s203
          %205 = dma.done %s201, 1024
        $region40: #{tpu_custom_call.1} parent=35 // pred_fallthru
          _
      $region36: #{tpu_custom_call.1} parent=5 // pred_fallthru
        _
    $region6: #{tpu_custom_call.1} parent=1 // loop_footer
      %s17 = sadd.s32 1, %s13
    $region7: #{tpu_custom_call.1} parent=1 // loop_footer_branch
      %12 = sbr.rel target = $region3
    $region8: #{tpu_custom_call.1} parent=1 // loop_exit
      _
    %206 = vsyncpa [#allocation3], 1
    %s207 = scalar_lea.sflag [#allocation3], 1
    %208 = vsyncpa %s207, 1
    %209 = vsyncpa [#allocation4], 1
    %s210 = scalar_lea.sflag [#allocation4], 1
    %211 = vsyncpa %s210, 1

</llo_original>
